<compile_context>
chip_gen: v7x
topology: tpu7x:2x2x1
jax: 0.10.0
libtpu: 0.0.40
codegen_flags: <defaults>
</compile_context>

<pallas_src>
import functools

import jax
import jax.numpy as jnp
from jax import lax
from jax.experimental import pallas as pl
from jax.experimental.pallas import tpu as pltpu


def _label_smooth_ce_kernel(pred_ref, label_ref, out_ref, *, smoothing: float,
                            n_total: int, tile_n: int, need_mask: bool):
    # pred_ref : (tile_n, C) input dtype, VMEM
    # label_ref: (tile_n, 1) int32,       VMEM
    # out_ref  : (1, 8, 128) float32,     VMEM  (per-tile partial sum, splatted)
    x = pred_ref[...].astype(jnp.float32)                 # (tn, C) f32 compute
    tn, c = x.shape

    # Stable log-sum-exp per row (exp goes to the EUP slot).
    m = jnp.max(x, axis=1, keepdims=True)                 # (tn, 1)
    lse = m + jnp.log(jnp.sum(jnp.exp(x - m), axis=1, keepdims=True))  # (tn, 1)

    # Fused label/background reduction:
    #   w_c = (1-s)*onehot_c + s/C ;  sum_c w_c == 1
    #   per_row = sum_c w_c * (lse - x_c) = lse - sum_c w_c * x_c
    labels = label_ref[...]                               # (tn, 1) int32
    col = lax.broadcasted_iota(jnp.int32, (tn, c), 1)     # (tn, C)
    w_lo = smoothing / c
    w_hi = 1.0 - smoothing + w_lo
    weights = jnp.where(col == labels, w_hi, w_lo)        # (tn, C)
    weighted = jnp.sum(x * weights, axis=1, keepdims=True)  # (tn, 1)
    per_row = lse - weighted                              # (tn, 1)

    if need_mask:
        # Mask rows past the true batch size (padded final tile) with a
        # SELECT so garbage/NaN rows cannot propagate into the sum.
        i = pl.program_id(0)
        row_id = i * tile_n + lax.broadcasted_iota(jnp.int32, (tn, 1), 0)
        per_row = jnp.where(row_id < n_total, per_row, 0.0)

    partial = jnp.sum(per_row)
    out_ref[...] = jnp.full(out_ref.shape, partial, dtype=jnp.float32)


def _choose_tile_n(n: int, c: int, itemsize: int) -> int:
    # Native packed sublane multiple: 8 (f32), 16 (bf16), 32 (int8/fp8).
    sub = max(8, 32 // max(1, itemsize))

    # Per-row VMEM footprint: 2x native-dtype pred tile (double-buffered DMA)
    # plus ~3 f32 tiles for the cast `x`, the weights and the exp temp.
    bytes_per_row = c * (2 * itemsize + 3 * 4)
    budget = 10 << 20   # fits every generation's default scoped-VMEM budget
    t = budget // max(1, bytes_per_row)
    t = max(sub, min(int(t), 8192))
    t = (t // sub) * sub

    if n <= t:
        # Whole batch fits one tile: split in two so the "parallel" batch
        # axis can use both v7x TensorCores (cheap on single-TC chips).
        if n > sub:
            half = -(-n // 2)                 # ceil(n / 2)
            half = -(-half // sub) * sub      # round up to sublane multiple
            return min(half, n)
        return n
    return t


def label_smooth_ce_loss(pred: jax.Array, label: jax.Array,
                         smoothing: float = 0.1, tile_n: int | None = None):
    """pred: (N, C) float (any dtype), label: (N,) int. Returns scalar f32 loss."""
    n, c = pred.shape
    itemsize = jnp.dtype(pred.dtype).itemsize
    if tile_n is None:
        tile_n = _choose_tile_n(n, c, itemsize)
    num_tiles = (n + tile_n - 1) // tile_n
    need_mask = (n % tile_n) != 0

    label_col = label.astype(jnp.int32).reshape(n, 1)

    kernel = functools.partial(_label_smooth_ce_kernel,
                               smoothing=float(smoothing),
                               n_total=n, tile_n=tile_n, need_mask=need_mask)

    cost = pl.CostEstimate(
        flops=6 * n * c,
        transcendentals=n * c + n,
        bytes_accessed=n * c * itemsize + n * 4 + num_tiles * 8 * 128 * 4,
    )

    partials = pl.pallas_call(
        kernel,
        out_shape=jax.ShapeDtypeStruct((num_tiles, 8, 128), jnp.float32),
        grid=(num_tiles,),
        in_specs=[
            pl.BlockSpec((tile_n, c), lambda i: (i, 0)),   # pred tile (native dtype)
            pl.BlockSpec((tile_n, 1), lambda i: (i, 0)),   # label column tile
        ],
        out_specs=pl.BlockSpec((1, 8, 128), lambda i: (i, 0, 0)),
        compiler_params=pltpu.CompilerParams(
            dimension_semantics=("parallel",),
            vmem_limit_bytes=32 << 20),
        cost_estimate=cost,
    )(pred, label_col)

    return jnp.sum(partials[:, 0, 0]) / n


def _reference(pred, label, smoothing=0.1):
    # Pure-JAX reference mirroring the PyTorch module exactly.
    p = jax.nn.softmax(pred.astype(jnp.float32), axis=1)
    one_hot = jax.nn.one_hot(label, pred.shape[1], dtype=jnp.float32)
    smoothed = (1.0 - smoothing) * one_hot + smoothing / pred.shape[1]
    loss = -jnp.log(p) * smoothed
    return jnp.mean(jnp.sum(loss, axis=1))


if __name__ == "__main__":
    key = jax.random.PRNGKey(0)
    k1, k2, k3, k4, k5, k6 = jax.random.split(key, 6)

    # Small case (single tile, block dims equal to full array dims).
    N, C = 8, 32
    pred = jax.random.normal(k1, (N, C), dtype=jnp.float32)
    label = jax.random.randint(k2, (N,), 0, C, dtype=jnp.int32)

    loss = jax.block_until_ready(label_smooth_ce_loss(pred, label, smoothing=0.1))
    ref = _reference(pred, label, smoothing=0.1)
    assert jnp.allclose(loss, ref, atol=1e-5, rtol=1e-5), (loss, ref)

    # Multi-tile case with a ragged final tile (exercises masking + grid).
    N2, C2, T2 = 300, 256, 64            # 5 tiles, last tile has 44 valid rows
    pred2 = jax.random.normal(k3, (N2, C2), dtype=jnp.float32)
    label2 = jax.random.randint(k4, (N2,), 0, C2, dtype=jnp.int32)

    loss2 = jax.block_until_ready(
        label_smooth_ce_loss(pred2, label2, smoothing=0.1, tile_n=T2))
    ref2 = _reference(pred2, label2, smoothing=0.1)
    assert jnp.allclose(loss2, ref2, atol=1e-4, rtol=1e-4), (loss2, ref2)

    # bf16 case with the auto tile chooser (native-dtype HBM read, >= 2 tiles).
    N3, C3 = 128, 128
    pred3 = jax.random.normal(k5, (N3, C3), dtype=jnp.float32).astype(jnp.bfloat16)
    label3 = jax.random.randint(k6, (N3,), 0, C3, dtype=jnp.int32)

    loss3 = jax.block_until_ready(
        label_smooth_ce_loss(pred3, label3, smoothing=0.1))
    ref3 = _reference(pred3, label3, smoothing=0.1)
    assert jnp.allclose(loss3, ref3, atol=2e-3, rtol=2e-3), (loss3, ref3)

    print("KERNEL_OK")
</pallas_src>

<mosaic_0001>
module attributes {stable_mosaic.version = 11 : i64} {
  func.func @_label_smooth_ce_kernel(%arg0: i32, %arg1: memref<8x32xf32, #tpu.memory_space<vmem>>, %arg2: memref<8x1xi32, #tpu.memory_space<vmem>>, %arg3: memref<1x8x128xf32, #tpu.memory_space<vmem>>) attributes {dimension_semantics = [#tpu.dimension_semantics<parallel>], iteration_bounds = array<i64: 1>, scalar_prefetch = 0 : i64, scratch_operands = 0 : i64, tpu.core_type = #tpu.core_type<tc>, window_params = [{transform_indices = @transform_0, window_bounds = array<i64: 8, 32>}, {transform_indices = @transform_1, window_bounds = array<i64: 8, 1>}, {transform_indices = @transform_2, window_bounds = array<i64: 1, 8, 128>}]} {
    %c0 = arith.constant 0 : index
    %c0_0 = arith.constant 0 : index
    %0 = vector.load %arg1[%c0, %c0_0] : memref<8x32xf32, #tpu.memory_space<vmem>>, vector<8x32xf32>
    %cst = arith.constant dense<0xFF800000> : vector<8xf32>
    %1 = vector.multi_reduction <maximumf>, %0, %cst [1] : vector<8x32xf32> to vector<8xf32>
    %2 = vector.shape_cast %1 : vector<8xf32> to vector<8x1xf32>
    %3 = vector.broadcast %2 : vector<8x1xf32> to vector<8x32xf32>
    %4 = arith.subf %0, %3 : vector<8x32xf32>
    %5 = math.exp %4 : vector<8x32xf32>
    %cst_1 = arith.constant dense<0.000000e+00> : vector<8xf32>
    %6 = vector.multi_reduction <add>, %5, %cst_1 [1] : vector<8x32xf32> to vector<8xf32>
    %7 = vector.shape_cast %6 : vector<8xf32> to vector<8x1xf32>
    %8 = math.log %7 : vector<8x1xf32>
    %9 = arith.addf %2, %8 : vector<8x1xf32>
    %c0_2 = arith.constant 0 : index
    %c0_3 = arith.constant 0 : index
    %10 = vector.load %arg2[%c0_2, %c0_3] : memref<8x1xi32, #tpu.memory_space<vmem>>, vector<8x1xi32>
    %11 = tpu.iota {dimensions = array<i32: 1>} : vector<8x32xi32>
    %12 = vector.broadcast %10 : vector<8x1xi32> to vector<8x32xi32>
    %13 = arith.cmpi eq, %11, %12 : vector<8x32xi32>
    %cst_4 = arith.constant 0.903124988 : f32
    %cst_5 = arith.constant 3.125000e-03 : f32
    %14 = vector.broadcast %cst_4 : f32 to vector<8x32xf32>
    %15 = vector.broadcast %cst_5 : f32 to vector<8x32xf32>
    %16 = arith.select %13, %14, %15 : vector<8x32xi1>, vector<8x32xf32>
    %17 = arith.mulf %0, %16 : vector<8x32xf32>
    %cst_6 = arith.constant dense<0.000000e+00> : vector<8xf32>
    %18 = vector.multi_reduction <add>, %17, %cst_6 [1] : vector<8x32xf32> to vector<8xf32>
    %19 = vector.shape_cast %18 : vector<8xf32> to vector<8x1xf32>
    %20 = arith.subf %9, %19 : vector<8x1xf32>
    %21 = vector.shape_cast %20 : vector<8x1xf32> to vector<1x8x1xf32>
    %cst_7 = arith.constant dense<0.000000e+00> : vector<1xf32>
    %22 = vector.multi_reduction <add>, %21, %cst_7 [1, 2] : vector<1x8x1xf32> to vector<1xf32>
    %23 = vector.shape_cast %22 : vector<1xf32> to vector<1x1x1xf32>
    %24 = vector.extract %23[0, 0, 0] : f32 from vector<1x1x1xf32>
    %25 = vector.broadcast %24 : f32 to vector<1x8x128xf32>
    %c0_8 = arith.constant 0 : index
    %c0_9 = arith.constant 0 : index
    %c0_10 = arith.constant 0 : index
    %26 = vector.load %arg3[%c0_8, %c0_9, %c0_10] : memref<1x8x128xf32, #tpu.memory_space<vmem>>, vector<1x8x128xf32>
    tpu.vector_store %arg3[%c0_8, %c0_9, %c0_10], %25 {strides = array<i32>} : memref<1x8x128xf32, #tpu.memory_space<vmem>>, vector<1x8x128xf32>,
    return
  }
  func.func @transform_0(%arg0: i32) -> (i32, i32) {
    %c0_i32 = arith.constant 0 : i32
    %c0_i32_0 = arith.constant 0 : i32
    return %arg0, %c0_i32 : i32, i32
  }
  func.func @transform_1(%arg0: i32) -> (i32, i32) {
    %c0_i32 = arith.constant 0 : i32
    %c0_i32_0 = arith.constant 0 : i32
    return %arg0, %c0_i32 : i32, i32
  }
  func.func @transform_2(%arg0: i32) -> (i32, i32, i32) {
    %c0_i32 = arith.constant 0 : i32
    %c0_i32_0 = arith.constant 0 : i32
    %c0_i32_1 = arith.constant 0 : i32
    return %arg0, %c0_i32, %c0_i32_0 : i32, i32, i32
  }
}

</mosaic_0001>

<llo_original>
// kernel: tpu_custom_call.1
$region0: #{tpu_custom_call.1}
  #allocation0 [shape = 'u32[]', space=smem, size = 0x4, offset = 0x4, fixed_abs, tag = 'smem constant byte address 0x4 - core index']
  #allocation1 [shape = 'u32[144,128]{1,0:T(1,128)}', space=vmem, size = 0x12000, scoped, tag = 'internal scratch']
  %s0 = inlined_call_operand.vmem [shape: f32[8,32], index: 0, kind: input, shape index: {}]
  %s1 = inlined_call_operand.vmem [shape: s32[8,1], index: 1, kind: input, shape index: {}]
  %s2 = inlined_call_operand.hbm [shape: f32[1,8,128], index: 2, kind: output, shape index: {}]
  %s3 = sld [smem:[#allocation0]]
  $region18: #{tpu_custom_call.1} parent=0
    _
  %s5 = ssub.s32 1, %s3
  %s6 = scalar_select 0, %s5, %s3
  $region1: #{tpu_custom_call.1} parent=0
    #allocation2 [shape = 'u8[4096]{0}', space=vmem, size = 0x1000, scoped, tag = 'output window, operand 0, single buffered']
    #allocation3 [shape = 's32[1]{0}', space=sflag, size = 0x4, scoped, tag = 'scoped memory for tpu_custom_call.1']
    %7 = vsyncpa [#allocation3], 0
    // Predicated region
    $region2: #{tpu_custom_call.1} parent=1 // pred_check
      _
    $region3: #{tpu_custom_call.1} parent=1 // pred_check_branch
      %9 = sbr.rel (0) target = $region5
    $region4: #{tpu_custom_call.1} parent=1 // pred_region
      _
    $region5: #{tpu_custom_call.1} parent=1 // pred_fallthru
      _
    // Predicated region
    $region6: #{tpu_custom_call.1} parent=1 // pred_check
      _
    $region7: #{tpu_custom_call.1} parent=1 // pred_check_branch
      %11 = sbr.rel (0) target = $region9
    $region8: #{tpu_custom_call.1} parent=1 // pred_region
      _
    $region9: #{tpu_custom_call.1} parent=1 // pred_fallthru
      _
    %v12 = vld [vmem:[%s0] sm:$0xff]
    %vm13 = vcmask 261120
    %v14 = vsel %vm13, %v12, -inf
    %15 = vmax.xlane.f32.xlu0 %v14
    %v16 = vpop.xlane.xlu0 %15
    %v17 = vsub.f32 %v12, %v16
    %v18 = vmul.f32 %v17, 1.442695
    %v19 = vpow.pop %v18
    %v20 = vsel %vm13, %v19, 0.0
    %21 = vadd.xlane.f32.xlu0 %v20
    %v22 = vpop.xlane.xlu0 %21
    %v23 = vlog2.pop %v22
    %v24 = vmul.f32 %v23, 0.6931472
    %v25 = vadd.f32 %v16, %v24
    %v26 = vld [vmem:[%s1] sm:$0xff]
    %v27 = vlaneseq
    %v28 = vand.u32 %v27, 127
    %29 = vset.pattern.permute.xlu0 0
    %30 = vperm.xlu0 %29, %v26
    %v31 = vpop.permute.xlu0 %30
    %vm32 = vcmp.eq.s32.totalorder %v28, %v31
    %v33 = vsel %vm32, 0.903125, 0.003125
    %v34 = vmul.f32 %v12, %v33
    %v35 = vsel %vm13, %v34, 0.0
    %36 = vadd.xlane.f32.xlu0 %v35
    %v37 = vpop.xlane.xlu0 %36
    %v38 = vsub.f32 %v25, %v37
    %vm39 = vcmask 7168
    %v40 = vsel %vm39, %v38, 0.0
    %41 = vadd.xlane.f32.xlu0 %v40
    %v42 = vpop.xlane.xlu0 %41
    %v43 = vrot.slane %v42, 4
    %v44 = vadd.f32 %v42, %v43
    %v45 = vrot.slane %v44, 2
    %v46 = vadd.f32 %v44, %v45
    %v47 = vrot.slane %v46, 1
    %v48 = vadd.f32 %v46, %v47
    %s49 = vtos %v48
    %v50 = vstv %s49
    %51 = vst [vmem:[#allocation2] sm:$0xff] %v50
    // Predicated region
    $region10: #{tpu_custom_call.1} parent=1 // pred_check
      _
    $region11: #{tpu_custom_call.1} parent=1 // pred_check_branch
      %53 = sbr.rel (0) target = $region13
    $region12: #{tpu_custom_call.1} parent=1 // pred_region
      %s55 = ssub.s32 128, 128
      %56 = vsyncadd [#allocation3], %s55
      %s58 = sshll.u32 [#allocation2], 4
      %s59 = int_to_ptr.vmem [resolvable:$true] %s58
      %61 = dma.vmem_to_hbm [thread:$0]  %s59, 128, %s2, [#allocation3]
    $region13: #{tpu_custom_call.1} parent=1 // pred_fallthru
      _
    // Predicated region
    $region14: #{tpu_custom_call.1} parent=1 // pred_check
      _
    $region15: #{tpu_custom_call.1} parent=1 // pred_check_branch
      %63 = sbr.rel (0) target = $region17
    $region16: #{tpu_custom_call.1} parent=1 // pred_region
      %64 = dma.done [#allocation3], 128
    $region17: #{tpu_custom_call.1} parent=1 // pred_fallthru
      _
    %65 = vsyncpa [#allocation3], 1

</llo_original>
